<compile_context>
chip_gen: v5e
topology: v5e:2x2
jax: 0.10.0
libtpu: 0.0.40
codegen_flags: <defaults>
</compile_context>

<pallas_src>
import jax
import jax.numpy as jnp
from jax.experimental import pallas as pl
from jax.experimental.pallas import tpu as pltpu


def _round_up(x, m):
    return ((x + m - 1) // m) * m


def policy_kernel(x_ref, mask_ref, gum_ref, w1_ref, w2_ref, aux_ref,
                  op_ref, lp_ref):
    # x_ref   : (in_chnl, N_pad) bf16   node features, nodes lane-dense
    # mask_ref: (1, N_pad)       f32    1.0 on feasible node ids, 0.0 elsewhere
    # gum_ref : (1, N_pad)       f32    Gumbel(0,1) noise
    # w1_ref  : (hidden, in)     bf16
    # w2_ref  : (hidden, hidden) bf16
    # aux_ref : (hidden, 4)      f32    [b1 | b2 | w3 | b3*ones]
    # op_ref  : (1, 1) int32            sampled node id
    # lp_ref  : (1, 1) f32              log-prob of the sample
    n_pad = mask_ref.shape[1]

    aux = aux_ref[...]                       # (hidden, 4) f32, single load
    b1c = aux[:, 0:1]                        # (hidden, 1)
    b2c = aux[:, 1:2]
    w3c = aux[:, 2:3]
    b3v = aux[0:1, 3:4]                      # (1, 1) static element read

    # Layer 1: (hidden, in) @ (in, N_pad) -> (hidden, N_pad), f32 accumulate.
    h1 = jnp.dot(w1_ref[...], x_ref[...], preferred_element_type=jnp.float32)
    h1 = jnp.maximum(h1 + b1c, 0.0).astype(jnp.bfloat16)

    # Layer 2: (hidden, hidden) @ (hidden, N_pad) -> (hidden, N_pad).
    h2 = jnp.dot(w2_ref[...], h1, preferred_element_type=jnp.float32)
    h2 = jnp.maximum(h2 + b2c, 0.0)

    # Layer 3 (out_chnl == 1): VPU multiply + sublane reduce -> lane-dense (1, N_pad).
    logits = jnp.sum(h2 * w3c, axis=0, keepdims=True) + b3v

    # Feasibility mask (dense, precomputed in the wrapper).
    # NOTE: the feasible set must be non-empty (same requirement as the torch code).
    mask = mask_ref[...] > 0.0
    neg = jnp.float32(-1e30)
    masked = jnp.where(mask, logits, neg)

    # log-softmax restricted to the feasible set (== log_softmax(logit[feasible])).
    m = jnp.max(masked, axis=1, keepdims=True)
    z = jnp.sum(jnp.exp(masked - m), axis=1, keepdims=True)
    log_pi = masked - m - jnp.log(z)

    # Categorical sample via Gumbel-max.
    # TODO(synk): torch.distributions' RNG stream cannot be reproduced; Gumbel
    # noise is generated with jax.random in the wrapper (same distribution,
    # different stream) since the on-chip PRNG is not portable to interpret mode.
    scores = jnp.where(mask, logits + gum_ref[...], neg)
    best = jnp.max(scores, axis=1, keepdims=True)
    lane = jax.lax.broadcasted_iota(jnp.int32, (1, n_pad), 1)
    sampled = jnp.min(jnp.where(scores >= best, lane, n_pad),
                      axis=1, keepdims=True)                    # (1,1) int32

    lp = jnp.sum(jnp.where(lane == sampled, log_pi, 0.0),
                 axis=1, keepdims=True)                         # (1,1) f32

    op_ref[...] = sampled
    lp_ref[...] = lp


def init_params(key, in_chnl=8, hidden_chnl=256, out_chnl=1):
    """PyTorch-Linear-like init; weights stored as (in, out), biases (1, out)."""
    ks = jax.random.split(key, 6)

    def lin(kw, kb, fan_in, fan_out):
        bound = 1.0 / jnp.sqrt(fan_in)
        w = jax.random.uniform(kw, (fan_in, fan_out), jnp.float32, -bound, bound)
        b = jax.random.uniform(kb, (1, fan_out), jnp.float32, -bound, bound)
        return w, b

    w1, b1 = lin(ks[0], ks[1], in_chnl, hidden_chnl)
    w2, b2 = lin(ks[2], ks[3], hidden_chnl, hidden_chnl)
    w3, b3 = lin(ks[4], ks[5], hidden_chnl, out_chnl)
    return (w1, b1, w2, b2, w3, b3)


def prepare_params(raw_params):
    """One-time conversion to the kernel layout: transposed bf16 weights + packed aux."""
    w1, b1, w2, b2, w3, b3 = raw_params
    hidden = w1.shape[1]
    w1_t = jnp.asarray(w1.T, jnp.bfloat16)          # (hidden, in)
    w2_t = jnp.asarray(w2.T, jnp.bfloat16)          # (hidden, hidden)
    aux = jnp.stack(
        [b1.reshape(-1), b2.reshape(-1), w3.reshape(-1),
         jnp.broadcast_to(b3.reshape(()), (hidden,))],
        axis=1).astype(jnp.float32)                 # (hidden, 4)
    return (w1_t, w2_t, aux)


def _policy_forward_pallas(x_b, mask_b, gum_b, params):
    """Batched fused forward.

    x_b   : (B, in_chnl, N_pad) bf16
    mask_b: (B, 1, N_pad)       f32
    gum_b : (B, 1, N_pad)       f32
    Returns (sampled_ops (B,) int32, log_probs (B,) f32).
    """
    w1_t, w2_t, aux = params
    batch, in_chnl, n_pad = x_b.shape
    hidden = w1_t.shape[0]

    out_id, out_lp = pl.pallas_call(
        policy_kernel,
        grid=(batch,),
        in_specs=[
            pl.BlockSpec((None, in_chnl, n_pad), lambda b: (b, 0, 0)),
            pl.BlockSpec((None, 1, n_pad), lambda b: (b, 0, 0)),
            pl.BlockSpec((None, 1, n_pad), lambda b: (b, 0, 0)),
            # Weights: constant block index -> DMA'd once, VMEM-resident over B.
            pl.BlockSpec((hidden, in_chnl), lambda b: (0, 0)),
            pl.BlockSpec((hidden, hidden), lambda b: (0, 0)),
            pl.BlockSpec((hidden, 4), lambda b: (0, 0)),
        ],
        out_specs=(
            pl.BlockSpec((None, 1, 1), lambda b: (b, 0, 0)),
            pl.BlockSpec((None, 1, 1), lambda b: (b, 0, 0)),
        ),
        out_shape=(
            jax.ShapeDtypeStruct((batch, 1, 1), jnp.int32),
            jax.ShapeDtypeStruct((batch, 1, 1), jnp.float32),
        ),
        compiler_params=pltpu.CompilerParams(
            dimension_semantics=("parallel",)),   # shards batch across TCs on v7x
    )(x_b, mask_b, gum_b, w1_t, w2_t, aux)

    return out_id[:, 0, 0], out_lp[:, 0, 0]


def policy_net_forward(node_h, feasible_op_id, params, key):
    """Equivalent of PolicyNet.forward: returns (sampled_op, log_prob)."""
    n, in_chnl = node_h.shape
    n_pad = _round_up(max(n, 1), 128)       # lane-dense node axis

    x = jnp.zeros((1, in_chnl, n_pad), jnp.bfloat16)
    x = x.at[0, :, :n].set(node_h.T.astype(jnp.bfloat16))

    mask = jnp.zeros((n_pad,), jnp.float32).at[feasible_op_id].set(1.0)
    mask = mask.reshape(1, 1, n_pad)

    u = jax.random.uniform(key, (1, 1, n_pad), jnp.float32,
                           minval=1e-7, maxval=1.0)
    gumbel = -jnp.log(-jnp.log(u))

    ops, lps = _policy_forward_pallas(x, mask, gumbel, params)
    return ops[0], lps[0]


def policy_net_forward_batch(node_h_b, feasible_mask_b, params, key):
    """B independent decisions in one pallas_call (weights stay VMEM-resident)."""
    batch, n, in_chnl = node_h_b.shape
    n_pad = _round_up(max(n, 1), 128)

    x = jnp.zeros((batch, in_chnl, n_pad), jnp.bfloat16)
    x = x.at[:, :, :n].set(jnp.swapaxes(node_h_b, 1, 2).astype(jnp.bfloat16))

    mask = jnp.zeros((batch, 1, n_pad), jnp.float32)
    mask = mask.at[:, 0, :n].set(feasible_mask_b.astype(jnp.float32))

    u = jax.random.uniform(key, (batch, 1, n_pad), jnp.float32,
                           minval=1e-7, maxval=1.0)
    gumbel = -jnp.log(-jnp.log(u))

    return _policy_forward_pallas(x, mask, gumbel, params)


if __name__ == "__main__":
    key = jax.random.PRNGKey(0)
    pkey, xkey, skey, bxkey, bskey = jax.random.split(key, 5)

    in_chnl, hidden_chnl, out_chnl = 8, 256, 1
    N = 8  # number of nodes

    raw_params = init_params(pkey, in_chnl, hidden_chnl, out_chnl)
    params = prepare_params(raw_params)
    node_h = jax.random.normal(xkey, (N, in_chnl), jnp.float32)
    feasible_op_id = jnp.array([0, 2, 3, 5], dtype=jnp.int32)

    # Single-decision forward (matches PolicyNet.forward).
    fwd = jax.jit(policy_net_forward)
    sampled_op, log_prob = fwd(node_h, feasible_op_id, params, skey)
    jax.block_until_ready((sampled_op, log_prob))

    # Reference (plain JAX, bf16-rounded weights, f32 math).
    w1, b1, w2, b2, w3, b3 = raw_params
    bf = lambda a: a.astype(jnp.bfloat16).astype(jnp.float32)

    def ref_logits(nh):
        h1 = jnp.maximum(bf(nh) @ bf(w1) + b1, 0.0)
        h2 = jnp.maximum(bf(h1) @ bf(w2) + b2, 0.0)
        return (h2 @ w3 + b3).reshape(-1)

    logit = ref_logits(node_h)
    log_pi_ref = jax.nn.log_softmax(logit[feasible_op_id], axis=0)
    feas_set = set(int(i) for i in feasible_op_id)
    assert int(sampled_op) in feas_set, (int(sampled_op), feas_set)
    assert float(log_prob) <= 1e-5, float(log_prob)
    pos = int(jnp.argmax(feasible_op_id == sampled_op))
    ref_lp = float(log_pi_ref[pos])
    assert abs(float(log_prob) - ref_lp) < 2e-2, (float(log_prob), ref_lp)

    # Batched forward: B decisions, one pallas_call, weights DMA'd once.
    B = 4
    node_h_b = jax.random.normal(bxkey, (B, N, in_chnl), jnp.float32)
    feasible_mask_b = jnp.zeros((B, N), bool).at[
        :, jnp.array([0, 2, 3, 5])].set(True)
    ops_b, lps_b = jax.jit(policy_net_forward_batch)(
        node_h_b, feasible_mask_b, params, bskey)
    jax.block_until_ready((ops_b, lps_b))

    for b in range(B):
        logit_b = ref_logits(node_h_b[b])
        ml = jnp.where(feasible_mask_b[b], logit_b, -1e30)
        log_pi_b = jax.nn.log_softmax(ml)
        s = int(ops_b[b])
        assert bool(feasible_mask_b[b][s]), (b, s)
        assert float(lps_b[b]) <= 1e-5, float(lps_b[b])
        assert abs(float(lps_b[b]) - float(log_pi_b[s])) < 2e-2, (
            b, float(lps_b[b]), float(log_pi_b[s]))

    print("KERNEL_OK")
</pallas_src>

<mosaic_0001>
module attributes {stable_mosaic.version = 11 : i64} {
  func.func @policy_kernel(%arg0: i32, %arg1: memref<1x8x128xbf16, #tpu.memory_space<vmem>>, %arg2: memref<1x1x128xf32, #tpu.memory_space<vmem>>, %arg3: memref<1x1x128xf32, #tpu.memory_space<vmem>>, %arg4: memref<256x8xbf16, #tpu.memory_space<vmem>>, %arg5: memref<256x256xbf16, #tpu.memory_space<vmem>>, %arg6: memref<256x4xf32, #tpu.memory_space<vmem>>, %arg7: memref<1x1x1xi32, #tpu.memory_space<vmem>>, %arg8: memref<1x1x1xf32, #tpu.memory_space<vmem>>) attributes {dimension_semantics = [#tpu.dimension_semantics<parallel>], iteration_bounds = array<i64: 1>, scalar_prefetch = 0 : i64, scratch_operands = 0 : i64, tpu.core_type = #tpu.core_type<tc>, window_params = [{transform_indices = @transform_0, window_bounds = array<i64: 1, 8, 128>}, {transform_indices = @transform_1, window_bounds = array<i64: 1, 1, 128>}, {transform_indices = @transform_2, window_bounds = array<i64: 1, 1, 128>}, {pipeline_mode = #tpu.pipeline_mode<synchronous>, transform_indices = @transform_3, window_bounds = array<i64: 256, 8>}, {pipeline_mode = #tpu.pipeline_mode<synchronous>, transform_indices = @transform_4, window_bounds = array<i64: 256, 256>}, {pipeline_mode = #tpu.pipeline_mode<synchronous>, transform_indices = @transform_5, window_bounds = array<i64: 256, 4>}, {transform_indices = @transform_6, window_bounds = array<i64: 1, 1, 1>}, {transform_indices = @transform_7, window_bounds = array<i64: 1, 1, 1>}]} {
    %c0 = arith.constant 0 : index
    %c0_0 = arith.constant 0 : index
    %0 = vector.load %arg6[%c0, %c0_0] : memref<256x4xf32, #tpu.memory_space<vmem>>, vector<256x4xf32>
    %1 = vector.extract_strided_slice %0 {offsets = [0, 0], sizes = [256, 1], strides = [1, 1]} : vector<256x4xf32> to vector<256x1xf32>
    %2 = vector.extract_strided_slice %0 {offsets = [0, 1], sizes = [256, 1], strides = [1, 1]} : vector<256x4xf32> to vector<256x1xf32>
    %3 = vector.extract_strided_slice %0 {offsets = [0, 2], sizes = [256, 1], strides = [1, 1]} : vector<256x4xf32> to vector<256x1xf32>
    %4 = vector.extract_strided_slice %0 {offsets = [0, 3], sizes = [1, 1], strides = [1, 1]} : vector<256x4xf32> to vector<1x1xf32>
    %c0_1 = arith.constant 0 : index
    %c0_2 = arith.constant 0 : index
    %5 = vector.load %arg4[%c0_1, %c0_2] : memref<256x8xbf16, #tpu.memory_space<vmem>>, vector<256x8xbf16>
    %c0_3 = arith.constant 0 : index
    %c0_4 = arith.constant 0 : index
    %c0_5 = arith.constant 0 : index
    %6 = vector.load %arg1[%c0_3, %c0_4, %c0_5] : memref<1x8x128xbf16, #tpu.memory_space<vmem>>, vector<1x8x128xbf16>
    %7 = vector.shape_cast %6 : vector<1x8x128xbf16> to vector<8x128xbf16>
    %cst = arith.constant dense<0.000000e+00> : vector<256x128xf32>
    %8 = tpu.matmul %5, %7, %cst {dimension_numbers = #tpu.dot_dimension_numbers<[1], [0], [0], [1], [0, 0, 1, 1], [], []>} : vector<256x8xbf16>, vector<8x128xbf16>, vector<256x128xf32> -> vector<256x128xf32>
    %9 = vector.broadcast %1 : vector<256x1xf32> to vector<256x128xf32>
    %10 = arith.addf %8, %9 : vector<256x128xf32>
    %cst_6 = arith.constant 0.000000e+00 : f32
    %11 = vector.broadcast %cst_6 : f32 to vector<256x128xf32>
    %12 = arith.maximumf %10, %11 : vector<256x128xf32>
    %13 = arith.truncf %12 : vector<256x128xf32> to vector<256x128xbf16>
    %c0_7 = arith.constant 0 : index
    %c0_8 = arith.constant 0 : index
    %14 = vector.load %arg5[%c0_7, %c0_8] : memref<256x256xbf16, #tpu.memory_space<vmem>>, vector<256x256xbf16>
    %cst_9 = arith.constant dense<0.000000e+00> : vector<256x128xf32>
    %15 = tpu.matmul %14, %13, %cst_9 {dimension_numbers = #tpu.dot_dimension_numbers<[1], [0], [0], [1], [0, 0, 1, 1], [], []>} : vector<256x256xbf16>, vector<256x128xbf16>, vector<256x128xf32> -> vector<256x128xf32>
    %16 = vector.broadcast %2 : vector<256x1xf32> to vector<256x128xf32>
    %17 = arith.addf %15, %16 : vector<256x128xf32>
    %cst_10 = arith.constant 0.000000e+00 : f32
    %18 = vector.broadcast %cst_10 : f32 to vector<256x128xf32>
    %19 = arith.maximumf %17, %18 : vector<256x128xf32>
    %20 = vector.broadcast %3 : vector<256x1xf32> to vector<256x128xf32>
    %21 = arith.mulf %19, %20 : vector<256x128xf32>
    %cst_11 = arith.constant dense<0.000000e+00> : vector<128xf32>
    %22 = vector.multi_reduction <add>, %21, %cst_11 [0] : vector<256x128xf32> to vector<128xf32>
    %23 = vector.shape_cast %22 : vector<128xf32> to vector<1x128xf32>
    %24 = vector.broadcast %4 : vector<1x1xf32> to vector<1x128xf32>
    %25 = arith.addf %23, %24 : vector<1x128xf32>
    %c0_12 = arith.constant 0 : index
    %c0_13 = arith.constant 0 : index
    %c0_14 = arith.constant 0 : index
    %26 = vector.load %arg2[%c0_12, %c0_13, %c0_14] : memref<1x1x128xf32, #tpu.memory_space<vmem>>, vector<1x1x128xf32>
    %27 = vector.shape_cast %26 : vector<1x1x128xf32> to vector<1x128xf32>
    %cst_15 = arith.constant 0.000000e+00 : f32
    %28 = vector.broadcast %cst_15 : f32 to vector<1x128xf32>
    %29 = arith.cmpf ogt, %27, %28 : vector<1x128xf32>
    %cst_16 = arith.constant -1.000000e+30 : f32
    %30 = vector.broadcast %cst_16 : f32 to vector<1x128xf32>
    %31 = arith.select %29, %25, %30 : vector<1x128xi1>, vector<1x128xf32>
    %cst_17 = arith.constant dense<0xFF800000> : vector<1xf32>
    %32 = vector.multi_reduction <maximumf>, %31, %cst_17 [1] : vector<1x128xf32> to vector<1xf32>
    %33 = vector.shape_cast %32 : vector<1xf32> to vector<1x1xf32>
    %34 = vector.broadcast %33 : vector<1x1xf32> to vector<1x128xf32>
    %35 = arith.subf %31, %34 : vector<1x128xf32>
    %36 = math.exp %35 : vector<1x128xf32>
    %cst_18 = arith.constant dense<0.000000e+00> : vector<1xf32>
    %37 = vector.multi_reduction <add>, %36, %cst_18 [1] : vector<1x128xf32> to vector<1xf32>
    %38 = vector.shape_cast %37 : vector<1xf32> to vector<1x1xf32>
    %39 = vector.broadcast %33 : vector<1x1xf32> to vector<1x128xf32>
    %40 = arith.subf %31, %39 : vector<1x128xf32>
    %41 = math.log %38 : vector<1x1xf32>
    %42 = vector.broadcast %41 : vector<1x1xf32> to vector<1x128xf32>
    %43 = arith.subf %40, %42 : vector<1x128xf32>
    %c0_19 = arith.constant 0 : index
    %c0_20 = arith.constant 0 : index
    %c0_21 = arith.constant 0 : index
    %44 = vector.load %arg3[%c0_19, %c0_20, %c0_21] : memref<1x1x128xf32, #tpu.memory_space<vmem>>, vector<1x1x128xf32>
    %45 = vector.shape_cast %44 : vector<1x1x128xf32> to vector<1x128xf32>
    %46 = arith.addf %25, %45 : vector<1x128xf32>
    %cst_22 = arith.constant -1.000000e+30 : f32
    %47 = vector.broadcast %cst_22 : f32 to vector<1x128xf32>
    %48 = arith.select %29, %46, %47 : vector<1x128xi1>, vector<1x128xf32>
    %cst_23 = arith.constant dense<0xFF800000> : vector<1xf32>
    %49 = vector.multi_reduction <maximumf>, %48, %cst_23 [1] : vector<1x128xf32> to vector<1xf32>
    %50 = vector.shape_cast %49 : vector<1xf32> to vector<1x1xf32>
    %51 = tpu.iota {dimensions = array<i32: 1>} : vector<1x128xi32>
    %52 = vector.broadcast %50 : vector<1x1xf32> to vector<1x128xf32>
    %53 = arith.cmpf oge, %48, %52 : vector<1x128xf32>
    %c128_i32 = arith.constant 128 : i32
    %54 = vector.broadcast %c128_i32 : i32 to vector<1x128xi32>
    %55 = arith.select %53, %51, %54 : vector<1x128xi1>, vector<1x128xi32>
    %cst_24 = arith.constant dense<2147483647> : vector<1xi32>
    %56 = vector.multi_reduction <minsi>, %55, %cst_24 [1] : vector<1x128xi32> to vector<1xi32>
    %57 = vector.shape_cast %56 : vector<1xi32> to vector<1x1xi32>
    %58 = vector.broadcast %57 : vector<1x1xi32> to vector<1x128xi32>
    %59 = arith.cmpi eq, %51, %58 : vector<1x128xi32>
    %cst_25 = arith.constant 0.000000e+00 : f32
    %60 = vector.broadcast %cst_25 : f32 to vector<1x128xf32>
    %61 = arith.select %59, %43, %60 : vector<1x128xi1>, vector<1x128xf32>
    %cst_26 = arith.constant dense<0.000000e+00> : vector<1xf32>
    %62 = vector.multi_reduction <add>, %61, %cst_26 [1] : vector<1x128xf32> to vector<1xf32>
    %63 = vector.shape_cast %62 : vector<1xf32> to vector<1x1xf32>
    %c0_27 = arith.constant 0 : index
    %c0_28 = arith.constant 0 : index
    %c0_29 = arith.constant 0 : index
    %64 = vector.load %arg7[%c0_27, %c0_28, %c0_29] : memref<1x1x1xi32, #tpu.memory_space<vmem>>, vector<1x1x1xi32>
    %65 = vector.shape_cast %64 : vector<1x1x1xi32> to vector<1x1xi32>
    %66 = vector.shape_cast %57 : vector<1x1xi32> to vector<1x1x1xi32>
    tpu.vector_store %arg7[%c0_27, %c0_28, %c0_29], %66 {strides = array<i32>} : memref<1x1x1xi32, #tpu.memory_space<vmem>>, vector<1x1x1xi32>,
    %c0_30 = arith.constant 0 : index
    %c0_31 = arith.constant 0 : index
    %c0_32 = arith.constant 0 : index
    %67 = vector.load %arg8[%c0_30, %c0_31, %c0_32] : memref<1x1x1xf32, #tpu.memory_space<vmem>>, vector<1x1x1xf32>
    %68 = vector.shape_cast %67 : vector<1x1x1xf32> to vector<1x1xf32>
    %69 = vector.shape_cast %63 : vector<1x1xf32> to vector<1x1x1xf32>
    tpu.vector_store %arg8[%c0_30, %c0_31, %c0_32], %69 {strides = array<i32>} : memref<1x1x1xf32, #tpu.memory_space<vmem>>, vector<1x1x1xf32>,
    return
  }
  func.func @transform_0(%arg0: i32) -> (i32, i32, i32) {
    %c0_i32 = arith.constant 0 : i32
    %c0_i32_0 = arith.constant 0 : i32
    %c0_i32_1 = arith.constant 0 : i32
    return %arg0, %c0_i32, %c0_i32_0 : i32, i32, i32
  }
  func.func @transform_1(%arg0: i32) -> (i32, i32, i32) {
    %c0_i32 = arith.constant 0 : i32
    %c0_i32_0 = arith.constant 0 : i32
    %c0_i32_1 = arith.constant 0 : i32
    return %arg0, %c0_i32, %c0_i32_0 : i32, i32, i32
  }
  func.func @transform_2(%arg0: i32) -> (i32, i32, i32) {
    %c0_i32 = arith.constant 0 : i32
    %c0_i32_0 = arith.constant 0 : i32
    %c0_i32_1 = arith.constant 0 : i32
    return %arg0, %c0_i32, %c0_i32_0 : i32, i32, i32
  }
  func.func @transform_3(%arg0: i32) -> (i32, i32) {
    %c0_i32 = arith.constant 0 : i32
    %c0_i32_0 = arith.constant 0 : i32
    %c0_i32_1 = arith.constant 0 : i32
    return %c0_i32, %c0_i32_0 : i32, i32
  }
  func.func @transform_4(%arg0: i32) -> (i32, i32) {
    %c0_i32 = arith.constant 0 : i32
    %c0_i32_0 = arith.constant 0 : i32
    %c0_i32_1 = arith.constant 0 : i32
    return %c0_i32, %c0_i32_0 : i32, i32
  }
  func.func @transform_5(%arg0: i32) -> (i32, i32) {
    %c0_i32 = arith.constant 0 : i32
    %c0_i32_0 = arith.constant 0 : i32
    %c0_i32_1 = arith.constant 0 : i32
    return %c0_i32, %c0_i32_0 : i32, i32
  }
  func.func @transform_6(%arg0: i32) -> (i32, i32, i32) {
    %c0_i32 = arith.constant 0 : i32
    %c0_i32_0 = arith.constant 0 : i32
    %c0_i32_1 = arith.constant 0 : i32
    return %arg0, %c0_i32, %c0_i32_0 : i32, i32, i32
  }
  func.func @transform_7(%arg0: i32) -> (i32, i32, i32) {
    %c0_i32 = arith.constant 0 : i32
    %c0_i32_0 = arith.constant 0 : i32
    %c0_i32_1 = arith.constant 0 : i32
    return %arg0, %c0_i32, %c0_i32_0 : i32, i32, i32
  }
}

</mosaic_0001>

<llo_original>
// kernel: policy_net_forward.1
$region0: #{policy_net_forward.1}
  #allocation0 [shape = 'u32[]', space=smem, size = 0x4, offset = 0x4, fixed_abs, tag = 'smem constant byte address 0x4 - core index']
  #allocation1 [shape = 'u32[72,128]{1,0:T(1,128)}', space=vmem, size = 0x9000, scoped, tag = 'internal scratch']
  %s0 = inlined_call_operand.vmem [shape: bf16[1,8,128], index: 0, kind: input, shape index: {}]
  %s1 = inlined_call_operand.vmem [shape: f32[1,1,128], index: 1, kind: input, shape index: {}]
  %s2 = inlined_call_operand.vmem [shape: f32[1,1,128], index: 2, kind: input, shape index: {}]
  %s3 = inlined_call_operand.vmem [shape: bf16[256,8], index: 3, kind: input, shape index: {}]
  %s4 = inlined_call_operand.vmem [shape: bf16[256,256], index: 4, kind: input, shape index: {}]
  %s5 = inlined_call_operand.vmem [shape: f32[256,4], index: 5, kind: input, shape index: {}]
  %s6 = inlined_call_operand.hbm [shape: s32[1,1,1], index: 6, kind: output, shape index: {0}]
  %s7 = inlined_call_operand.hbm [shape: f32[1,1,1], index: 7, kind: output, shape index: {1}]
  %8 = xla_tuple %s6, %s7
  %s9 = sld [smem:[#allocation0]]
  $region42: #{policy_net_forward.1} parent=0
    _
  %s11 = ssub.s32 1, %s9
  %s12 = scalar_select 0, %s11, %s9
  $region1: #{policy_net_forward.1} parent=0
    #allocation2 [shape = 'u8[512]{0}', space=vmem, size = 0x400, scoped, tag = 'output window, operand 0, single buffered']
    #allocation3 [shape = 's32[1]{0}', space=sflag, size = 0x4, scoped, tag = 'scoped memory for policy_net_forward.1']
    #allocation4 [shape = 'u8[512]{0}', space=vmem, size = 0x400, scoped, tag = 'output window, operand 1, single buffered']
    #allocation5 [shape = 's32[1]{0}', space=sflag, size = 0x4, scoped, tag = 'scoped memory for policy_net_forward.1']
    %13 = vsyncpa [#allocation3], 0
    %14 = vsyncpa [#allocation5], 0
    // Predicated region
    $region2: #{policy_net_forward.1} parent=1 // pred_check
      _
    $region3: #{policy_net_forward.1} parent=1 // pred_check_branch
      %16 = sbr.rel (0) target = $region5
    $region4: #{policy_net_forward.1} parent=1 // pred_region
      _
    $region5: #{policy_net_forward.1} parent=1 // pred_fallthru
      _
    // Predicated region
    $region6: #{policy_net_forward.1} parent=1 // pred_check
      _
    $region7: #{policy_net_forward.1} parent=1 // pred_check_branch
      %18 = sbr.rel (0) target = $region9
    $region8: #{policy_net_forward.1} parent=1 // pred_region
      _
    $region9: #{policy_net_forward.1} parent=1 // pred_fallthru
      _
    // Predicated region
    $region10: #{policy_net_forward.1} parent=1 // pred_check
      _
    $region11: #{policy_net_forward.1} parent=1 // pred_check_branch
      %20 = sbr.rel (0) target = $region13
    $region12: #{policy_net_forward.1} parent=1 // pred_region
      _
    $region13: #{policy_net_forward.1} parent=1 // pred_fallthru
      _
    // Predicated region
    $region14: #{policy_net_forward.1} parent=1 // pred_check
      _
    $region15: #{policy_net_forward.1} parent=1 // pred_check_branch
      %22 = sbr.rel (0) target = $region17
    $region16: #{policy_net_forward.1} parent=1 // pred_region
      _
    $region17: #{policy_net_forward.1} parent=1 // pred_fallthru
      _
    // Predicated region
    $region18: #{policy_net_forward.1} parent=1 // pred_check
      _
    $region19: #{policy_net_forward.1} parent=1 // pred_check_branch
      %24 = sbr.rel (0) target = $region21
    $region20: #{policy_net_forward.1} parent=1 // pred_region
      _
    $region21: #{policy_net_forward.1} parent=1 // pred_fallthru
      _
    // Predicated region
    $region22: #{policy_net_forward.1} parent=1 // pred_check
      _
    $region23: #{policy_net_forward.1} parent=1 // pred_check_branch
      %26 = sbr.rel (0) target = $region25
    $region24: #{policy_net_forward.1} parent=1 // pred_region
      _
    $region25: #{policy_net_forward.1} parent=1 // pred_fallthru
      _
    %v28 = vld [vmem:[%s5] sm:$0xff]
    %v29 = vld [vmem:[%s5 + $0x8] sm:$0xff]
    %v30 = vld [vmem:[%s5 + $0x10] sm:$0xff]
    %v31 = vld [vmem:[%s5 + $0x18] sm:$0xff]
    %v32 = vld [vmem:[%s5 + $0x20] sm:$0xff]
    %v33 = vld [vmem:[%s5 + $0x28] sm:$0xff]
    %v34 = vld [vmem:[%s5 + $0x30] sm:$0xff]
    %v35 = vld [vmem:[%s5 + $0x38] sm:$0xff]
    %v36 = vld [vmem:[%s5 + $0x40] sm:$0xff]
    %v37 = vld [vmem:[%s5 + $0x48] sm:$0xff]
    %v38 = vld [vmem:[%s5 + $0x50] sm:$0xff]
    %v39 = vld [vmem:[%s5 + $0x58] sm:$0xff]
    %v40 = vld [vmem:[%s5 + $0x60] sm:$0xff]
    %v41 = vld [vmem:[%s5 + $0x68] sm:$0xff]
    %v42 = vld [vmem:[%s5 + $0x70] sm:$0xff]
    %v43 = vld [vmem:[%s5 + $0x78] sm:$0xff]
    %v44 = vld [vmem:[%s5 + $0x80] sm:$0xff]
    %v45 = vld [vmem:[%s5 + $0x88] sm:$0xff]
    %v46 = vld [vmem:[%s5 + $0x90] sm:$0xff]
    %v47 = vld [vmem:[%s5 + $0x98] sm:$0xff]
    %v48 = vld [vmem:[%s5 + $0xa0] sm:$0xff]
    %v49 = vld [vmem:[%s5 + $0xa8] sm:$0xff]
    %v50 = vld [vmem:[%s5 + $0xb0] sm:$0xff]
    %v51 = vld [vmem:[%s5 + $0xb8] sm:$0xff]
    %v52 = vld [vmem:[%s5 + $0xc0] sm:$0xff]
    %v53 = vld [vmem:[%s5 + $0xc8] sm:$0xff]
    %v54 = vld [vmem:[%s5 + $0xd0] sm:$0xff]
    %v55 = vld [vmem:[%s5 + $0xd8] sm:$0xff]
    %v56 = vld [vmem:[%s5 + $0xe0] sm:$0xff]
    %v57 = vld [vmem:[%s5 + $0xe8] sm:$0xff]
    %v58 = vld [vmem:[%s5 + $0xf0] sm:$0xff]
    %v59 = vld [vmem:[%s5 + $0xf8] sm:$0xff]
    %v60 = vld [vmem:[%s3] sm:$0xf]
    %v61 = vld [vmem:[%s3 + $0x4] sm:$0xf]
    %v62 = vld [vmem:[%s3 + $0x8] sm:$0xf]
    %v63 = vld [vmem:[%s3 + $0xc] sm:$0xf]
    %v64 = vld [vmem:[%s3 + $0x10] sm:$0xf]
    %v65 = vld [vmem:[%s3 + $0x14] sm:$0xf]
    %v66 = vld [vmem:[%s3 + $0x18] sm:$0xf]
    %v67 = vld [vmem:[%s3 + $0x1c] sm:$0xf]
    %v68 = vld [vmem:[%s3 + $0x20] sm:$0xf]
    %v69 = vld [vmem:[%s3 + $0x24] sm:$0xf]
    %v70 = vld [vmem:[%s3 + $0x28] sm:$0xf]
    %v71 = vld [vmem:[%s3 + $0x2c] sm:$0xf]
    %v72 = vld [vmem:[%s3 + $0x30] sm:$0xf]
    %v73 = vld [vmem:[%s3 + $0x34] sm:$0xf]
    %v74 = vld [vmem:[%s3 + $0x38] sm:$0xf]
    %v75 = vld [vmem:[%s3 + $0x3c] sm:$0xf]
    %v76 = vld [vmem:[%s3 + $0x40] sm:$0xf]
    %v77 = vld [vmem:[%s3 + $0x44] sm:$0xf]
    %v78 = vld [vmem:[%s3 + $0x48] sm:$0xf]
    %v79 = vld [vmem:[%s3 + $0x4c] sm:$0xf]
    %v80 = vld [vmem:[%s3 + $0x50] sm:$0xf]
    %v81 = vld [vmem:[%s3 + $0x54] sm:$0xf]
    %v82 = vld [vmem:[%s3 + $0x58] sm:$0xf]
    %v83 = vld [vmem:[%s3 + $0x5c] sm:$0xf]
    %v84 = vld [vmem:[%s3 + $0x60] sm:$0xf]
    %v85 = vld [vmem:[%s3 + $0x64] sm:$0xf]
    %v86 = vld [vmem:[%s3 + $0x68] sm:$0xf]
    %v87 = vld [vmem:[%s3 + $0x6c] sm:$0xf]
    %v88 = vld [vmem:[%s3 + $0x70] sm:$0xf]
    %v89 = vld [vmem:[%s3 + $0x74] sm:$0xf]
    %v90 = vld [vmem:[%s3 + $0x78] sm:$0xf]
    %v91 = vld [vmem:[%s3 + $0x7c] sm:$0xf]
    %v92 = vld [vmem:[%s0] sm:$0xf]
    %94 = vset.pattern.permute.xlu0 0
    %95 = vperm.xlu0 %94, %v28
    %v96 = vpop.permute.xlu0 %95
    %99 = vset.pattern.permute.xlu0 0
    %100 = vperm.xlu0 %99, %v29
    %v101 = vpop.permute.xlu0 %100
    %104 = vset.pattern.permute.xlu0 0
    %105 = vperm.xlu0 %104, %v30
    %v106 = vpop.permute.xlu0 %105
    %109 = vset.pattern.permute.xlu0 0
    %110 = vperm.xlu0 %109, %v31
    %v111 = vpop.permute.xlu0 %110
    %114 = vset.pattern.permute.xlu0 0
    %115 = vperm.xlu0 %114, %v32
    %v116 = vpop.permute.xlu0 %115
    %119 = vset.pattern.permute.xlu0 0
    %120 = vperm.xlu0 %119, %v33
    %v121 = vpop.permute.xlu0 %120
    %124 = vset.pattern.permute.xlu0 0
    %125 = vperm.xlu0 %124, %v34
    %v126 = vpop.permute.xlu0 %125
    %129 = vset.pattern.permute.xlu0 0
    %130 = vperm.xlu0 %129, %v35
    %v131 = vpop.permute.xlu0 %130
    %134 = vset.pattern.permute.xlu0 0
    %135 = vperm.xlu0 %134, %v36
    %v136 = vpop.permute.xlu0 %135
    %139 = vset.pattern.permute.xlu0 0
    %140 = vperm.xlu0 %139, %v37
    %v141 = vpop.permute.xlu0 %140
    %144 = vset.pattern.permute.xlu0 0
    %145 = vperm.xlu0 %144, %v38
    %v146 = vpop.permute.xlu0 %145
    %149 = vset.pattern.permute.xlu0 0
    %150 = vperm.xlu0 %149, %v39
    %v151 = vpop.permute.xlu0 %150
    %154 = vset.pattern.permute.xlu0 0
    %155 = vperm.xlu0 %154, %v40
    %v156 = vpop.permute.xlu0 %155
    %159 = vset.pattern.permute.xlu0 0
    %160 = vperm.xlu0 %159, %v41
    %v161 = vpop.permute.xlu0 %160
    %164 = vset.pattern.permute.xlu0 0
    %165 = vperm.xlu0 %164, %v42
    %v166 = vpop.permute.xlu0 %165
    %169 = vset.pattern.permute.xlu0 0
    %170 = vperm.xlu0 %169, %v43
    %v171 = vpop.permute.xlu0 %170
    %174 = vset.pattern.permute.xlu0 0
    %175 = vperm.xlu0 %174, %v44
    %v176 = vpop.permute.xlu0 %175
    %179 = vset.pattern.permute.xlu0 0
    %180 = vperm.xlu0 %179, %v45
    %v181 = vpop.permute.xlu0 %180
    %184 = vset.pattern.permute.xlu0 0
    %185 = vperm.xlu0 %184, %v46
    %v186 = vpop.permute.xlu0 %185
    %189 = vset.pattern.permute.xlu0 0
    %190 = vperm.xlu0 %189, %v47
    %v191 = vpop.permute.xlu0 %190
    %194 = vset.pattern.permute.xlu0 0
    %195 = vperm.xlu0 %194, %v48
    %v196 = vpop.permute.xlu0 %195
    %199 = vset.pattern.permute.xlu0 0
    %200 = vperm.xlu0 %199, %v49
    %v201 = vpop.permute.xlu0 %200
    %204 = vset.pattern.permute.xlu0 0
    %205 = vperm.xlu0 %204, %v50
    %v206 = vpop.permute.xlu0 %205
    %209 = vset.pattern.permute.xlu0 0
    %210 = vperm.xlu0 %209, %v51
    %v211 = vpop.permute.xlu0 %210
    %214 = vset.pattern.permute.xlu0 0
    %215 = vperm.xlu0 %214, %v52
    %v216 = vpop.permute.xlu0 %215
    %219 = vset.pattern.permute.xlu0 0
    %220 = vperm.xlu0 %219, %v53
    %v221 = vpop.permute.xlu0 %220
    %224 = vset.pattern.permute.xlu0 0
    %225 = vperm.xlu0 %224, %v54
    %v226 = vpop.permute.xlu0 %225
    %229 = vset.pattern.permute.xlu0 0
    %230 = vperm.xlu0 %229, %v55
    %v231 = vpop.permute.xlu0 %230
    %234 = vset.pattern.permute.xlu0 0
    %235 = vperm.xlu0 %234, %v56
    %v236 = vpop.permute.xlu0 %235
    %239 = vset.pattern.permute.xlu0 0
    %240 = vperm.xlu0 %239, %v57
    %v241 = vpop.permute.xlu0 %240
    %244 = vset.pattern.permute.xlu0 0
    %245 = vperm.xlu0 %244, %v58
    %v246 = vpop.permute.xlu0 %245
    %249 = vset.pattern.permute.xlu0 0
    %250 = vperm.xlu0 %249, %v59
    %v251 = vpop.permute.xlu0 %250
    %v285 = vunpack.c.l.b16 %v60
    %v286 = vunpack.c.l.b16 %v61
    %v287 = vunpack.c.l.b16 %v62
    %v288 = vunpack.c.l.b16 %v63
    %v289 = vunpack.c.l.b16 %v64
    %v290 = vunpack.c.l.b16 %v65
    %v291 = vunpack.c.l.b16 %v66
    %v292 = vunpack.c.l.b16 %v67
    %v293 = vunpack.c.l.b16 %v68
    %v294 = vunpack.c.l.b16 %v69
    %v295 = vunpack.c.l.b16 %v70
    %v296 = vunpack.c.l.b16 %v71
    %v297 = vunpack.c.l.b16 %v72
    %v298 = vunpack.c.l.b16 %v73
    %v299 = vunpack.c.l.b16 %v74
    %v300 = vunpack.c.l.b16 %v75
    %v301 = vunpack.c.l.b16 %v76
    %v302 = vunpack.c.l.b16 %v77
    %v303 = vunpack.c.l.b16 %v78
    %v304 = vunpack.c.l.b16 %v79
    %v305 = vunpack.c.l.b16 %v80
    %v306 = vunpack.c.l.b16 %v81
    %v307 = vunpack.c.l.b16 %v82
    %v308 = vunpack.c.l.b16 %v83
    %v309 = vunpack.c.l.b16 %v84
    %v310 = vunpack.c.l.b16 %v85
    %v311 = vunpack.c.l.b16 %v86
    %v312 = vunpack.c.l.b16 %v87
    %v313 = vunpack.c.l.b16 %v88
    %v314 = vunpack.c.l.b16 %v89
    %v315 = vunpack.c.l.b16 %v90
    %v316 = vunpack.c.l.b16 %v91
    %v317 = vpack.c.b16 %v286, %v285
    %v318 = vpack.c.b16 %v288, %v287
    %v319 = vpack.c.b16 %v290, %v289
    %v320 = vpack.c.b16 %v292, %v291
    %v321 = vpack.c.b16 %v294, %v293
    %v322 = vpack.c.b16 %v296, %v295
    %v323 = vpack.c.b16 %v298, %v297
    %v324 = vpack.c.b16 %v300, %v299
    %v325 = vpack.c.b16 %v302, %v301
    %v326 = vpack.c.b16 %v304, %v303
    %v327 = vpack.c.b16 %v306, %v305
    %v328 = vpack.c.b16 %v308, %v307
    %v329 = vpack.c.b16 %v310, %v309
    %v330 = vpack.c.b16 %v312, %v311
    %v331 = vpack.c.b16 %v314, %v313
    %v332 = vpack.c.b16 %v316, %v315
    %vm333 = vcmask 64512
    %v335 = vsel %vm333, %v317, 0
    %v338 = vsel %vm333, %v318, 0
    %v341 = vsel %vm333, %v319, 0
    %v344 = vsel %vm333, %v320, 0
    %v347 = vsel %vm333, %v321, 0
    %v350 = vsel %vm333, %v322, 0
    %v353 = vsel %vm333, %v323, 0
    %v356 = vsel %vm333, %v324, 0
    %v359 = vsel %vm333, %v325, 0
    %v362 = vsel %vm333, %v326, 0
    %v365 = vsel %vm333, %v327, 0
    %v368 = vsel %vm333, %v328, 0
    %v371 = vsel %vm333, %v329, 0
    %v374 = vsel %vm333, %v330, 0
    %v377 = vsel %vm333, %v331, 0
    %v380 = vsel %vm333, %v332, 0
    %vm382 = vcmask 1043456
    %v384 = vsel %vm382, %v92, 0
    %386 = vmatpush.bf16.msra.mxu0 0
    %387 = vmatpush.bf16.msra.mxu0 0
    %388 = vmatpush.bf16.msra.mxu0 0
    %389 = vmatpush.bf16.msra.mxu0 0
    %390 = vmatpush.bf16.msra.mxu0 0
    %391 = vmatpush.bf16.msra.mxu0 0
    %392 = vmatpush.bf16.msra.mxu0 0
    %393 = vmatpush.bf16.msra.mxu0 %v384
    %394 = vmatmul.bf16.gmra.mxu0 %v335
    %v395 = vpop.f32.mrf.mxu0
    %v396 = vadd.f32 %v96, %v395
    %v397 = vpop.f32.mrf.mxu0
    %v398 = vadd.f32 %v101, %v397
    %399 = vmatmul.bf16.gmra.mxu0 %v338
    %v400 = vpop.f32.mrf.mxu0
    %v401 = vadd.f32 %v106, %v400
    %v402 = vpop.f32.mrf.mxu0
    %v403 = vadd.f32 %v111, %v402
    %404 = vmatmul.bf16.gmra.mxu0 %v341
    %v405 = vpop.f32.mrf.mxu0
    %v406 = vadd.f32 %v116, %v405
    %v407 = vpop.f32.mrf.mxu0
    %v408 = vadd.f32 %v121, %v407
    %409 = vmatmul.bf16.gmra.mxu0 %v344
    %v410 = vpop.f32.mrf.mxu0
    %v411 = vadd.f32 %v126, %v410
    %v412 = vpop.f32.mrf.mxu0
    %v413 = vadd.f32 %v131, %v412
    %414 = vmatmul.bf16.gmra.mxu0 %v347
    %v415 = vpop.f32.mrf.mxu0
    %v416 = vadd.f32 %v136, %v415
    %v417 = vpop.f32.mrf.mxu0
    %v418 = vadd.f32 %v141, %v417
    %419 = vmatmul.bf16.gmra.mxu0 %v350
    %v420 = vpop.f32.mrf.mxu0
    %v421 = vadd.f32 %v146, %v420
    %v422 = vpop.f32.mrf.mxu0
    %v423 = vadd.f32 %v151, %v422
    %424 = vmatmul.bf16.gmra.mxu0 %v353
    %v425 = vpop.f32.mrf.mxu0
    %v426 = vadd.f32 %v156, %v425
    %v427 = vpop.f32.mrf.mxu0
    %v428 = vadd.f32 %v161, %v427
    %429 = vmatmul.bf16.gmra.mxu0 %v356
    %v430 = vpop.f32.mrf.mxu0
    %v431 = vadd.f32 %v166, %v430
    %v432 = vpop.f32.mrf.mxu0
    %v433 = vadd.f32 %v171, %v432
    %434 = vmatmul.bf16.gmra.mxu0 %v359
    %v435 = vpop.f32.mrf.mxu0
    %v436 = vadd.f32 %v176, %v435
    %v437 = vpop.f32.mrf.mxu0
    %v438 = vadd.f32 %v181, %v437
    %439 = vmatmul.bf16.gmra.mxu0 %v362
    %v440 = vpop.f32.mrf.mxu0
    %v441 = vadd.f32 %v186, %v440
    %v442 = vpop.f32.mrf.mxu0
    %v443 = vadd.f32 %v191, %v442
    %444 = vmatmul.bf16.gmra.mxu0 %v365
    %v445 = vpop.f32.mrf.mxu0
    %v446 = vadd.f32 %v196, %v445
    %v447 = vpop.f32.mrf.mxu0
    %v448 = vadd.f32 %v201, %v447
    %449 = vmatmul.bf16.gmra.mxu0 %v368
    %v450 = vpop.f32.mrf.mxu0
    %v451 = vadd.f32 %v206, %v450
    %v452 = vpop.f32.mrf.mxu0
    %v453 = vadd.f32 %v211, %v452
    %454 = vmatmul.bf16.gmra.mxu0 %v371
    %v455 = vpop.f32.mrf.mxu0
    %v456 = vadd.f32 %v216, %v455
    %v457 = vpop.f32.mrf.mxu0
    %v458 = vadd.f32 %v221, %v457
    %459 = vmatmul.bf16.gmra.mxu0 %v374
    %v460 = vpop.f32.mrf.mxu0
    %v461 = vadd.f32 %v226, %v460
    %v462 = vpop.f32.mrf.mxu0
    %v463 = vadd.f32 %v231, %v462
    %464 = vmatmul.bf16.gmra.mxu0 %v377
    %v465 = vpop.f32.mrf.mxu0
    %v466 = vadd.f32 %v236, %v465
    %v467 = vpop.f32.mrf.mxu0
    %v468 = vadd.f32 %v241, %v467
    %469 = vmatmul.bf16.gmra.mxu0 %v380
    %v470 = vpop.f32.mrf.mxu0
    %v471 = vadd.f32 %v246, %v470
    %v472 = vpop.f32.mrf.mxu0
    %v473 = vadd.f32 %v251, %v472
    %474 = vdwg.mxu0
    %v475 = vmax.f32 %v396, 0.0
    %v476 = vmax.f32 %v398, 0.0
    %v477 = vmax.f32 %v401, 0.0
    %v478 = vmax.f32 %v403, 0.0
    %v479 = vmax.f32 %v406, 0.0
    %v480 = vmax.f32 %v408, 0.0
    %v481 = vmax.f32 %v411, 0.0
    %v482 = vmax.f32 %v413, 0.0
    %v483 = vmax.f32 %v416, 0.0
    %v484 = vmax.f32 %v418, 0.0
    %v485 = vmax.f32 %v421, 0.0
    %v486 = vmax.f32 %v423, 0.0
    %v487 = vmax.f32 %v426, 0.0
    %v488 = vmax.f32 %v428, 0.0
    %v489 = vmax.f32 %v431, 0.0
    %v490 = vmax.f32 %v433, 0.0
    %v491 = vmax.f32 %v436, 0.0
    %v492 = vmax.f32 %v438, 0.0
    %v493 = vmax.f32 %v441, 0.0
    %v494 = vmax.f32 %v443, 0.0
    %v495 = vmax.f32 %v446, 0.0
    %v496 = vmax.f32 %v448, 0.0
    %v497 = vmax.f32 %v451, 0.0
    %v498 = vmax.f32 %v453, 0.0
    %v499 = vmax.f32 %v456, 0.0
    %v500 = vmax.f32 %v458, 0.0
    %v501 = vmax.f32 %v461, 0.0
    %v502 = vmax.f32 %v463, 0.0
    %v503 = vmax.f32 %v466, 0.0
    %v504 = vmax.f32 %v468, 0.0
    %v505 = vmax.f32 %v471, 0.0
    %v506 = vmax.f32 %v473, 0.0
    %v507 = vpack.c.bf16 %v476, %v475
    %v508 = vpack.c.bf16 %v478, %v477
    %v509 = vpack.c.bf16 %v480, %v479
    %v510 = vpack.c.bf16 %v482, %v481
    %v511 = vpack.c.bf16 %v484, %v483
    %v512 = vpack.c.bf16 %v486, %v485
    %v513 = vpack.c.bf16 %v488, %v487
    %v514 = vpack.c.bf16 %v490, %v489
    %v515 = vpack.c.bf16 %v492, %v491
    %v516 = vpack.c.bf16 %v494, %v493
    %v517 = vpack.c.bf16 %v496, %v495
    %v518 = vpack.c.bf16 %v498, %v497
    %v519 = vpack.c.bf16 %v500, %v499
    %v520 = vpack.c.bf16 %v502, %v501
    %v521 = vpack.c.bf16 %v504, %v503
    %v522 = vpack.c.bf16 %v506, %v505
    %v523 = vld [vmem:[%s4] sm:$0xff]
    %v524 = vld [vmem:[%s4 + $0x8] sm:$0xff]
    %v525 = vld [vmem:[%s4 + $0x10] sm:$0xff]
    %v526 = vld [vmem:[%s4 + $0x18] sm:$0xff]
    %v527 = vld [vmem:[%s4 + $0x20] sm:$0xff]
    %v528 = vld [vmem:[%s4 + $0x28] sm:$0xff]
    %v529 = vld [vmem:[%s4 + $0x30] sm:$0xff]
    %v530 = vld [vmem:[%s4 + $0x38] sm:$0xff]
    %v531 = vld [vmem:[%s4 + $0x40] sm:$0xff]
    %v532 = vld [vmem:[%s4 + $0x48] sm:$0xff]
    %v533 = vld [vmem:[%s4 + $0x50] sm:$0xff]
    %v534 = vld [vmem:[%s4 + $0x58] sm:$0xff]
    %v535 = vld [vmem:[%s4 + $0x60] sm:$0xff]
    %v536 = vld [vmem:[%s4 + $0x68] sm:$0xff]
    %v537 = vld [vmem:[%s4 + $0x70] sm:$0xff]
    %v538 = vld [vmem:[%s4 + $0x78] sm:$0xff]
    %v539 = vld [vmem:[%s4 + $0x80] sm:$0xff]
    %v540 = vld [vmem:[%s4 + $0x88] sm:$0xff]
    %v541 = vld [vmem:[%s4 + $0x90] sm:$0xff]
    %v542 = vld [vmem:[%s4 + $0x98] sm:$0xff]
    %v543 = vld [vmem:[%s4 + $0xa0] sm:$0xff]
    %v544 = vld [vmem:[%s4 + $0xa8] sm:$0xff]
    %v545 = vld [vmem:[%s4 + $0xb0] sm:$0xff]
    %v546 = vld [vmem:[%s4 + $0xb8] sm:$0xff]
    %v547 = vld [vmem:[%s4 + $0xc0] sm:$0xff]
    %v548 = vld [vmem:[%s4 + $0xc8] sm:$0xff]
    %v549 = vld [vmem:[%s4 + $0xd0] sm:$0xff]
    %v550 = vld [vmem:[%s4 + $0xd8] sm:$0xff]
    %v551 = vld [vmem:[%s4 + $0xe0] sm:$0xff]
    %v552 = vld [vmem:[%s4 + $0xe8] sm:$0xff]
    %v553 = vld [vmem:[%s4 + $0xf0] sm:$0xff]
    %v554 = vld [vmem:[%s4 + $0xf8] sm:$0xff]
    %555 = vset.pattern.permute.xlu0 1
    %556 = vperm.xlu0 %555, %v28
    %v557 = vpop.permute.xlu0 %556
    %559 = vset.pattern.permute.xlu0 1
    %560 = vperm.xlu0 %559, %v29
    %v561 = vpop.permute.xlu0 %560
    %563 = vset.pattern.permute.xlu0 1
    %564 = vperm.xlu0 %563, %v30
    %v565 = vpop.permute.xlu0 %564
    %567 = vset.pattern.permute.xlu0 1
    %568 = vperm.xlu0 %567, %v31
    %v569 = vpop.permute.xlu0 %568
    %571 = vset.pattern.permute.xlu0 1
    %572 = vperm.xlu0 %571, %v32
    %v573 = vpop.permute.xlu0 %572
    %575 = vset.pattern.permute.xlu0 1
    %576 = vperm.xlu0 %575, %v33
    %v577 = vpop.permute.xlu0 %576
    %579 = vset.pattern.permute.xlu0 1
    %580 = vperm.xlu0 %579, %v34
    %v581 = vpop.permute.xlu0 %580
    %583 = vset.pattern.permute.xlu0 1
    %584 = vperm.xlu0 %583, %v35
    %v585 = vpop.permute.xlu0 %584
    %587 = vset.pattern.permute.xlu0 1
    %588 = vperm.xlu0 %587, %v36
    %v589 = vpop.permute.xlu0 %588
    %591 = vset.pattern.permute.xlu0 1
    %592 = vperm.xlu0 %591, %v37
    %v593 = vpop.permute.xlu0 %592
    %595 = vset.pattern.permute.xlu0 1
    %596 = vperm.xlu0 %595, %v38
    %v597 = vpop.permute.xlu0 %596
    %599 = vset.pattern.permute.xlu0 1
    %600 = vperm.xlu0 %599, %v39
    %v601 = vpop.permute.xlu0 %600
    %603 = vset.pattern.permute.xlu0 1
    %604 = vperm.xlu0 %603, %v40
    %v605 = vpop.permute.xlu0 %604
    %607 = vset.pattern.permute.xlu0 1
    %608 = vperm.xlu0 %607, %v41
    %v609 = vpop.permute.xlu0 %608
    %611 = vset.pattern.permute.xlu0 1
    %612 = vperm.xlu0 %611, %v42
    %v613 = vpop.permute.xlu0 %612
    %615 = vset.pattern.permute.xlu0 1
    %616 = vperm.xlu0 %615, %v43
    %v617 = vpop.permute.xlu0 %616
    %619 = vset.pattern.permute.xlu0 1
    %620 = vperm.xlu0 %619, %v44
    %v621 = vpop.permute.xlu0 %620
    %623 = vset.pattern.permute.xlu0 1
    %624 = vperm.xlu0 %623, %v45
    %v625 = vpop.permute.xlu0 %624
    %627 = vset.pattern.permute.xlu0 1
    %628 = vperm.xlu0 %627, %v46
    %v629 = vpop.permute.xlu0 %628
    %631 = vset.pattern.permute.xlu0 1
    %632 = vperm.xlu0 %631, %v47
    %v633 = vpop.permute.xlu0 %632
    %635 = vset.pattern.permute.xlu0 1
    %636 = vperm.xlu0 %635, %v48
    %v637 = vpop.permute.xlu0 %636
    %639 = vset.pattern.permute.xlu0 1
    %640 = vperm.xlu0 %639, %v49
    %v641 = vpop.permute.xlu0 %640
    %643 = vset.pattern.permute.xlu0 1
    %644 = vperm.xlu0 %643, %v50
    %v645 = vpop.permute.xlu0 %644
    %647 = vset.pattern.permute.xlu0 1
    %648 = vperm.xlu0 %647, %v51
    %v649 = vpop.permute.xlu0 %648
    %651 = vset.pattern.permute.xlu0 1
    %652 = vperm.xlu0 %651, %v52
    %v653 = vpop.permute.xlu0 %652
    %655 = vset.pattern.permute.xlu0 1
    %656 = vperm.xlu0 %655, %v53
    %v657 = vpop.permute.xlu0 %656
    %659 = vset.pattern.permute.xlu0 1
    %660 = vperm.xlu0 %659, %v54
    %v661 = vpop.permute.xlu0 %660
    %663 = vset.pattern.permute.xlu0 1
    %664 = vperm.xlu0 %663, %v55
    %v665 = vpop.permute.xlu0 %664
    %667 = vset.pattern.permute.xlu0 1
    %668 = vperm.xlu0 %667, %v56
    %v669 = vpop.permute.xlu0 %668
    %671 = vset.pattern.permute.xlu0 1
    %672 = vperm.xlu0 %671, %v57
    %v673 = vpop.permute.xlu0 %672
    %675 = vset.pattern.permute.xlu0 1
    %676 = vperm.xlu0 %675, %v58
    %v677 = vpop.permute.xlu0 %676
    %679 = vset.pattern.permute.xlu0 1
    %680 = vperm.xlu0 %679, %v59
    %v681 = vpop.permute.xlu0 %680
    %v715 = vunpack.c.l.b16 %v523
    %v716 = vunpack.c.h.b16 %v523
    %v717 = vunpack.c.l.b16 %v524
    %v718 = vunpack.c.h.b16 %v524
    %v719 = vunpack.c.l.b16 %v525
    %v720 = vunpack.c.h.b16 %v525
    %v721 = vunpack.c.l.b16 %v526
    %v722 = vunpack.c.h.b16 %v526
    %v723 = vunpack.c.l.b16 %v527
    %v724 = vunpack.c.h.b16 %v527
    %v725 = vunpack.c.l.b16 %v528
    %v726 = vunpack.c.h.b16 %v528
    %v727 = vunpack.c.l.b16 %v529
    %v728 = vunpack.c.h.b16 %v529
    %v729 = vunpack.c.l.b16 %v530
    %v730 = vunpack.c.h.b16 %v530
    %v731 = vunpack.c.l.b16 %v531
    %v732 = vunpack.c.h.b16 %v531
    %v733 = vunpack.c.l.b16 %v532
    %v734 = vunpack.c.h.b16 %v532
    %v735 = vunpack.c.l.b16 %v533
    %v736 = vunpack.c.h.b16 %v533
    %v737 = vunpack.c.l.b16 %v534
    %v738 = vunpack.c.h.b16 %v534
    %v739 = vunpack.c.l.b16 %v535
    %v740 = vunpack.c.h.b16 %v535
    %v741 = vunpack.c.l.b16 %v536
    %v742 = vunpack.c.h.b16 %v536
    %v743 = vunpack.c.l.b16 %v537
    %v744 = vunpack.c.h.b16 %v537
    %v745 = vunpack.c.l.b16 %v538
    %v746 = vunpack.c.h.b16 %v538
    %v747 = vunpack.c.l.b16 %v539
    %v748 = vunpack.c.h.b16 %v539
    %v749 = vunpack.c.l.b16 %v540
    %v750 = vunpack.c.h.b16 %v540
    %v751 = vunpack.c.l.b16 %v541
    %v752 = vunpack.c.h.b16 %v541
    %v753 = vunpack.c.l.b16 %v542
    %v754 = vunpack.c.h.b16 %v542
    %v755 = vunpack.c.l.b16 %v543
    %v756 = vunpack.c.h.b16 %v543
    %v757 = vunpack.c.l.b16 %v544
    %v758 = vunpack.c.h.b16 %v544
    %v759 = vunpack.c.l.b16 %v545
    %v760 = vunpack.c.h.b16 %v545
    %v761 = vunpack.c.l.b16 %v546
    %v762 = vunpack.c.h.b16 %v546
    %v763 = vunpack.c.l.b16 %v547
    %v764 = vunpack.c.h.b16 %v547
    %v765 = vunpack.c.l.b16 %v548
    %v766 = vunpack.c.h.b16 %v548
    %v767 = vunpack.c.l.b16 %v549
    %v768 = vunpack.c.h.b16 %v549
    %v769 = vunpack.c.l.b16 %v550
    %v770 = vunpack.c.h.b16 %v550
    %v771 = vunpack.c.l.b16 %v551
    %v772 = vunpack.c.h.b16 %v551
    %v773 = vunpack.c.l.b16 %v552
    %v774 = vunpack.c.h.b16 %v552
    %v775 = vunpack.c.l.b16 %v553
    %v776 = vunpack.c.h.b16 %v553
    %v777 = vunpack.c.l.b16 %v554
    %v778 = vunpack.c.h.b16 %v554
    %v779 = vpack.c.b16 %v717, %v715
    %v780 = vpack.c.b16 %v718, %v716
    %v781 = vpack.c.b16 %v721, %v719
    %v782 = vpack.c.b16 %v722, %v720
    %v783 = vpack.c.b16 %v725, %v723
    %v784 = vpack.c.b16 %v726, %v724
    %v785 = vpack.c.b16 %v729, %v727
    %v786 = vpack.c.b16 %v730, %v728
    %v787 = vpack.c.b16 %v733, %v731
    %v788 = vpack.c.b16 %v734, %v732
    %v789 = vpack.c.b16 %v737, %v735
    %v790 = vpack.c.b16 %v738, %v736
    %v791 = vpack.c.b16 %v741, %v739
    %v792 = vpack.c.b16 %v742, %v740
    %v793 = vpack.c.b16 %v745, %v743
    %v794 = vpack.c.b16 %v746, %v744
    %v795 = vpack.c.b16 %v749, %v747
    %v796 = vpack.c.b16 %v750, %v748
    %v797 = vpack.c.b16 %v753, %v751
    %v798 = vpack.c.b16 %v754, %v752
    %v799 = vpack.c.b16 %v757, %v755
    %v800 = vpack.c.b16 %v758, %v756
    %v801 = vpack.c.b16 %v761, %v759
    %v802 = vpack.c.b16 %v762, %v760
    %v803 = vpack.c.b16 %v765, %v763
    %v804 = vpack.c.b16 %v766, %v764
    %v805 = vpack.c.b16 %v769, %v767
    %v806 = vpack.c.b16 %v770, %v768
    %v807 = vpack.c.b16 %v773, %v771
    %v808 = vpack.c.b16 %v774, %v772
    %v809 = vpack.c.b16 %v777, %v775
    %v810 = vpack.c.b16 %v778, %v776
    %843 = vmatpush.bf16.msra.mxu0 %v514
    %844 = vmatpush.bf16.msra.mxu0 %v513
    %845 = vmatpush.bf16.msra.mxu0 %v512
    %846 = vmatpush.bf16.msra.mxu0 %v511
    %847 = vmatpush.bf16.msra.mxu0 %v510
    %848 = vmatpush.bf16.msra.mxu0 %v509
    %849 = vmatpush.bf16.msra.mxu0 %v508
    %850 = vmatpush.bf16.msra.mxu0 %v507
    %851 = vmatmul.bf16.gmra.mxu0 %v779
    %v852 = vpop.f32.mrf.mxu0
    %v853 = vadd.f32 %v557, %v852
    %v854 = vpop.f32.mrf.mxu0
    %v855 = vadd.f32 %v561, %v854
    %856 = vmatmul.bf16.gmra.mxu0 %v781
    %v857 = vpop.f32.mrf.mxu0
    %v858 = vadd.f32 %v565, %v857
    %v859 = vpop.f32.mrf.mxu0
    %v860 = vadd.f32 %v569, %v859
    %861 = vmatmul.bf16.gmra.mxu0 %v783
    %v862 = vpop.f32.mrf.mxu0
    %v863 = vadd.f32 %v573, %v862
    %v864 = vpop.f32.mrf.mxu0
    %v865 = vadd.f32 %v577, %v864
    %866 = vmatmul.bf16.gmra.mxu0 %v785
    %v867 = vpop.f32.mrf.mxu0
    %v868 = vadd.f32 %v581, %v867
    %v869 = vpop.f32.mrf.mxu0
    %v870 = vadd.f32 %v585, %v869
    %871 = vmatmul.bf16.gmra.mxu0 %v787
    %v872 = vpop.f32.mrf.mxu0
    %v873 = vadd.f32 %v589, %v872
    %v874 = vpop.f32.mrf.mxu0
    %v875 = vadd.f32 %v593, %v874
    %876 = vmatmul.bf16.gmra.mxu0 %v789
    %v877 = vpop.f32.mrf.mxu0
    %v878 = vadd.f32 %v597, %v877
    %v879 = vpop.f32.mrf.mxu0
    %v880 = vadd.f32 %v601, %v879
    %881 = vmatmul.bf16.gmra.mxu0 %v791
    %v882 = vpop.f32.mrf.mxu0
    %v883 = vadd.f32 %v605, %v882
    %v884 = vpop.f32.mrf.mxu0
    %v885 = vadd.f32 %v609, %v884
    %886 = vmatmul.bf16.gmra.mxu0 %v793
    %v887 = vpop.f32.mrf.mxu0
    %v888 = vadd.f32 %v613, %v887
    %v889 = vpop.f32.mrf.mxu0
    %v890 = vadd.f32 %v617, %v889
    %891 = vmatmul.bf16.gmra.mxu0 %v795
    %v892 = vpop.f32.mrf.mxu0
    %v893 = vadd.f32 %v621, %v892
    %v894 = vpop.f32.mrf.mxu0
    %v895 = vadd.f32 %v625, %v894
    %896 = vmatmul.bf16.gmra.mxu0 %v797
    %v897 = vpop.f32.mrf.mxu0
    %v898 = vadd.f32 %v629, %v897
    %v899 = vpop.f32.mrf.mxu0
    %v900 = vadd.f32 %v633, %v899
    %901 = vmatmul.bf16.gmra.mxu0 %v799
    %v902 = vpop.f32.mrf.mxu0
    %v903 = vadd.f32 %v637, %v902
    %v904 = vpop.f32.mrf.mxu0
    %v905 = vadd.f32 %v641, %v904
    %906 = vmatmul.bf16.gmra.mxu0 %v801
    %v907 = vpop.f32.mrf.mxu0
    %v908 = vadd.f32 %v645, %v907
    %v909 = vpop.f32.mrf.mxu0
    %v910 = vadd.f32 %v649, %v909
    %911 = vmatmul.bf16.gmra.mxu0 %v803
    %v912 = vpop.f32.mrf.mxu0
    %v913 = vadd.f32 %v653, %v912
    %v914 = vpop.f32.mrf.mxu0
    %v915 = vadd.f32 %v657, %v914
    %916 = vmatmul.bf16.gmra.mxu0 %v805
    %v917 = vpop.f32.mrf.mxu0
    %v918 = vadd.f32 %v661, %v917
    %v919 = vpop.f32.mrf.mxu0
    %v920 = vadd.f32 %v665, %v919
    %921 = vmatmul.bf16.gmra.mxu0 %v807
    %v922 = vpop.f32.mrf.mxu0
    %v923 = vadd.f32 %v669, %v922
    %v924 = vpop.f32.mrf.mxu0
    %v925 = vadd.f32 %v673, %v924
    %926 = vmatmul.bf16.gmra.mxu0 %v809
    %v927 = vpop.f32.mrf.mxu0
    %v928 = vadd.f32 %v677, %v927
    %v929 = vpop.f32.mrf.mxu0
    %v930 = vadd.f32 %v681, %v929
    %931 = vdwg.mxu0
    %932 = vmatpush.bf16.msra.mxu0 %v522
    %933 = vmatpush.bf16.msra.mxu0 %v521
    %934 = vmatpush.bf16.msra.mxu0 %v520
    %935 = vmatpush.bf16.msra.mxu0 %v519
    %936 = vmatpush.bf16.msra.mxu0 %v518
    %937 = vmatpush.bf16.msra.mxu0 %v517
    %938 = vmatpush.bf16.msra.mxu0 %v516
    %939 = vmatpush.bf16.msra.mxu0 %v515
    %940 = vmatmul.bf16.gmra.mxu0 %v780
    %v941 = vpop.f32.mrf.mxu0
    %v942 = vadd.f32 %v853, %v941
    %v943 = vpop.f32.mrf.mxu0
    %v944 = vadd.f32 %v855, %v943
    %945 = vmatmul.bf16.gmra.mxu0 %v782
    %v946 = vpop.f32.mrf.mxu0
    %v947 = vadd.f32 %v858, %v946
    %v948 = vpop.f32.mrf.mxu0
    %v949 = vadd.f32 %v860, %v948
    %950 = vmatmul.bf16.gmra.mxu0 %v784
    %v951 = vpop.f32.mrf.mxu0
    %v952 = vadd.f32 %v863, %v951
    %v953 = vpop.f32.mrf.mxu0
    %v954 = vadd.f32 %v865, %v953
    %955 = vmatmul.bf16.gmra.mxu0 %v786
    %v956 = vpop.f32.mrf.mxu0
    %v957 = vadd.f32 %v868, %v956
    %v958 = vpop.f32.mrf.mxu0
    %v959 = vadd.f32 %v870, %v958
    %960 = vmatmul.bf16.gmra.mxu0 %v788
    %v961 = vpop.f32.mrf.mxu0
    %v962 = vadd.f32 %v873, %v961
    %v963 = vpop.f32.mrf.mxu0
    %v964 = vadd.f32 %v875, %v963
    %965 = vmatmul.bf16.gmra.mxu0 %v790
    %v966 = vpop.f32.mrf.mxu0
    %v967 = vadd.f32 %v878, %v966
    %v968 = vpop.f32.mrf.mxu0
    %v969 = vadd.f32 %v880, %v968
    %970 = vmatmul.bf16.gmra.mxu0 %v792
    %v971 = vpop.f32.mrf.mxu0
    %v972 = vadd.f32 %v883, %v971
    %v973 = vpop.f32.mrf.mxu0
    %v974 = vadd.f32 %v885, %v973
    %975 = vmatmul.bf16.gmra.mxu0 %v794
    %v976 = vpop.f32.mrf.mxu0
    %v977 = vadd.f32 %v888, %v976
    %v978 = vpop.f32.mrf.mxu0
    %v979 = vadd.f32 %v890, %v978
    %980 = vmatmul.bf16.gmra.mxu0 %v796
    %v981 = vpop.f32.mrf.mxu0
    %v982 = vadd.f32 %v893, %v981
    %v983 = vpop.f32.mrf.mxu0
    %v984 = vadd.f32 %v895, %v983
    %985 = vmatmul.bf16.gmra.mxu0 %v798
    %v986 = vpop.f32.mrf.mxu0
    %v987 = vadd.f32 %v898, %v986
    %v988 = vpop.f32.mrf.mxu0
    %v989 = vadd.f32 %v900, %v988
    %990 = vmatmul.bf16.gmra.mxu0 %v800
    %v991 = vpop.f32.mrf.mxu0
    %v992 = vadd.f32 %v903, %v991
    %v993 = vpop.f32.mrf.mxu0
    %v994 = vadd.f32 %v905, %v993
    %995 = vmatmul.bf16.gmra.mxu0 %v802
    %v996 = vpop.f32.mrf.mxu0
    %v997 = vadd.f32 %v908, %v996
    %v998 = vpop.f32.mrf.mxu0
    %v999 = vadd.f32 %v910, %v998
    %1000 = vmatmul.bf16.gmra.mxu0 %v804
    %v1001 = vpop.f32.mrf.mxu0
    %v1002 = vadd.f32 %v913, %v1001
    %v1003 = vpop.f32.mrf.mxu0
    %v1004 = vadd.f32 %v915, %v1003
    %1005 = vmatmul.bf16.gmra.mxu0 %v806
    %v1006 = vpop.f32.mrf.mxu0
    %v1007 = vadd.f32 %v918, %v1006
    %v1008 = vpop.f32.mrf.mxu0
    %v1009 = vadd.f32 %v920, %v1008
    %1010 = vmatmul.bf16.gmra.mxu0 %v808
    %v1011 = vpop.f32.mrf.mxu0
    %v1012 = vadd.f32 %v923, %v1011
    %v1013 = vpop.f32.mrf.mxu0
    %v1014 = vadd.f32 %v925, %v1013
    %1015 = vmatmul.bf16.gmra.mxu0 %v810
    %v1016 = vpop.f32.mrf.mxu0
    %v1017 = vadd.f32 %v928, %v1016
    %v1018 = vpop.f32.mrf.mxu0
    %v1019 = vadd.f32 %v930, %v1018
    %1020 = vdwg.mxu0
    %v1021 = vmax.f32 %v942, 0.0
    %v1022 = vmax.f32 %v944, 0.0
    %v1023 = vmax.f32 %v947, 0.0
    %v1024 = vmax.f32 %v949, 0.0
    %v1025 = vmax.f32 %v952, 0.0
    %v1026 = vmax.f32 %v954, 0.0
    %v1027 = vmax.f32 %v957, 0.0
    %v1028 = vmax.f32 %v959, 0.0
    %v1029 = vmax.f32 %v962, 0.0
    %v1030 = vmax.f32 %v964, 0.0
    %v1031 = vmax.f32 %v967, 0.0
    %v1032 = vmax.f32 %v969, 0.0
    %v1033 = vmax.f32 %v972, 0.0
    %v1034 = vmax.f32 %v974, 0.0
    %v1035 = vmax.f32 %v977, 0.0
    %v1036 = vmax.f32 %v979, 0.0
    %v1037 = vmax.f32 %v982, 0.0
    %v1038 = vmax.f32 %v984, 0.0
    %v1039 = vmax.f32 %v987, 0.0
    %v1040 = vmax.f32 %v989, 0.0
    %v1041 = vmax.f32 %v992, 0.0
    %v1042 = vmax.f32 %v994, 0.0
    %v1043 = vmax.f32 %v997, 0.0
    %v1044 = vmax.f32 %v999, 0.0
    %v1045 = vmax.f32 %v1002, 0.0
    %v1046 = vmax.f32 %v1004, 0.0
    %v1047 = vmax.f32 %v1007, 0.0
    %v1048 = vmax.f32 %v1009, 0.0
    %v1049 = vmax.f32 %v1012, 0.0
    %v1050 = vmax.f32 %v1014, 0.0
    %v1051 = vmax.f32 %v1017, 0.0
    %v1052 = vmax.f32 %v1019, 0.0
    %1053 = vset.pattern.permute.xlu0 2
    %1054 = vperm.xlu0 %1053, %v28
    %v1055 = vpop.permute.xlu0 %1054
    %1057 = vset.pattern.permute.xlu0 2
    %1058 = vperm.xlu0 %1057, %v29
    %v1059 = vpop.permute.xlu0 %1058
    %1061 = vset.pattern.permute.xlu0 2
    %1062 = vperm.xlu0 %1061, %v30
    %v1063 = vpop.permute.xlu0 %1062
    %1065 = vset.pattern.permute.xlu0 2
    %1066 = vperm.xlu0 %1065, %v31
    %v1067 = vpop.permute.xlu0 %1066
    %1069 = vset.pattern.permute.xlu0 2
    %1070 = vperm.xlu0 %1069, %v32
    %v1071 = vpop.permute.xlu0 %1070
    %1073 = vset.pattern.permute.xlu0 2
    %1074 = vperm.xlu0 %1073, %v33
    %v1075 = vpop.permute.xlu0 %1074
    %1077 = vset.pattern.permute.xlu0 2
    %1078 = vperm.xlu0 %1077, %v34
    %v1079 = vpop.permute.xlu0 %1078
    %1081 = vset.pattern.permute.xlu0 2
    %1082 = vperm.xlu0 %1081, %v35
    %v1083 = vpop.permute.xlu0 %1082
    %1085 = vset.pattern.permute.xlu0 2
    %1086 = vperm.xlu0 %1085, %v36
    %v1087 = vpop.permute.xlu0 %1086
    %1089 = vset.pattern.permute.xlu0 2
    %1090 = vperm.xlu0 %1089, %v37
    %v1091 = vpop.permute.xlu0 %1090
    %1093 = vset.pattern.permute.xlu0 2
    %1094 = vperm.xlu0 %1093, %v38
    %v1095 = vpop.permute.xlu0 %1094
    %1097 = vset.pattern.permute.xlu0 2
    %1098 = vperm.xlu0 %1097, %v39
    %v1099 = vpop.permute.xlu0 %1098
    %1101 = vset.pattern.permute.xlu0 2
    %1102 = vperm.xlu0 %1101, %v40
    %v1103 = vpop.permute.xlu0 %1102
    %1105 = vset.pattern.permute.xlu0 2
    %1106 = vperm.xlu0 %1105, %v41
    %v1107 = vpop.permute.xlu0 %1106
    %1109 = vset.pattern.permute.xlu0 2
    %1110 = vperm.xlu0 %1109, %v42
    %v1111 = vpop.permute.xlu0 %1110
    %1113 = vset.pattern.permute.xlu0 2
    %1114 = vperm.xlu0 %1113, %v43
    %v1115 = vpop.permute.xlu0 %1114
    %1117 = vset.pattern.permute.xlu0 2
    %1118 = vperm.xlu0 %1117, %v44
    %v1119 = vpop.permute.xlu0 %1118
    %1121 = vset.pattern.permute.xlu0 2
    %1122 = vperm.xlu0 %1121, %v45
    %v1123 = vpop.permute.xlu0 %1122
    %1125 = vset.pattern.permute.xlu0 2
    %1126 = vperm.xlu0 %1125, %v46
    %v1127 = vpop.permute.xlu0 %1126
    %1129 = vset.pattern.permute.xlu0 2
    %1130 = vperm.xlu0 %1129, %v47
    %v1131 = vpop.permute.xlu0 %1130
    %1133 = vset.pattern.permute.xlu0 2
    %1134 = vperm.xlu0 %1133, %v48
    %v1135 = vpop.permute.xlu0 %1134
    %1137 = vset.pattern.permute.xlu0 2
    %1138 = vperm.xlu0 %1137, %v49
    %v1139 = vpop.permute.xlu0 %1138
    %1141 = vset.pattern.permute.xlu0 2
    %1142 = vperm.xlu0 %1141, %v50
    %v1143 = vpop.permute.xlu0 %1142
    %1145 = vset.pattern.permute.xlu0 2
    %1146 = vperm.xlu0 %1145, %v51
    %v1147 = vpop.permute.xlu0 %1146
    %1149 = vset.pattern.permute.xlu0 2
    %1150 = vperm.xlu0 %1149, %v52
    %v1151 = vpop.permute.xlu0 %1150
    %1153 = vset.pattern.permute.xlu0 2
    %1154 = vperm.xlu0 %1153, %v53
    %v1155 = vpop.permute.xlu0 %1154
    %1157 = vset.pattern.permute.xlu0 2
    %1158 = vperm.xlu0 %1157, %v54
    %v1159 = vpop.permute.xlu0 %1158
    %1161 = vset.pattern.permute.xlu0 2
    %1162 = vperm.xlu0 %1161, %v55
    %v1163 = vpop.permute.xlu0 %1162
    %1165 = vset.pattern.permute.xlu0 2
    %1166 = vperm.xlu0 %1165, %v56
    %v1167 = vpop.permute.xlu0 %1166
    %1169 = vset.pattern.permute.xlu0 2
    %1170 = vperm.xlu0 %1169, %v57
    %v1171 = vpop.permute.xlu0 %1170
    %1173 = vset.pattern.permute.xlu0 2
    %1174 = vperm.xlu0 %1173, %v58
    %v1175 = vpop.permute.xlu0 %1174
    %1177 = vset.pattern.permute.xlu0 2
    %1178 = vperm.xlu0 %1177, %v59
    %v1179 = vpop.permute.xlu0 %1178
    %v1181 = vmul.f32 %v1021, %v1055
    %v1182 = vmul.f32 %v1022, %v1059
    %v1183 = vmul.f32 %v1023, %v1063
    %v1184 = vmul.f32 %v1024, %v1067
    %v1185 = vmul.f32 %v1025, %v1071
    %v1186 = vmul.f32 %v1026, %v1075
    %v1187 = vmul.f32 %v1027, %v1079
    %v1188 = vmul.f32 %v1028, %v1083
    %v1189 = vmul.f32 %v1029, %v1087
    %v1190 = vmul.f32 %v1030, %v1091
    %v1191 = vmul.f32 %v1031, %v1095
    %v1192 = vmul.f32 %v1032, %v1099
    %v1193 = vmul.f32 %v1033, %v1103
    %v1194 = vmul.f32 %v1034, %v1107
    %v1195 = vmul.f32 %v1035, %v1111
    %v1196 = vmul.f32 %v1036, %v1115
    %v1197 = vmul.f32 %v1037, %v1119
    %v1198 = vmul.f32 %v1038, %v1123
    %v1199 = vmul.f32 %v1039, %v1127
    %v1200 = vmul.f32 %v1040, %v1131
    %v1201 = vmul.f32 %v1041, %v1135
    %v1202 = vmul.f32 %v1042, %v1139
    %v1203 = vmul.f32 %v1043, %v1143
    %v1204 = vmul.f32 %v1044, %v1147
    %v1205 = vmul.f32 %v1045, %v1151
    %v1206 = vmul.f32 %v1046, %v1155
    %v1207 = vmul.f32 %v1047, %v1159
    %v1208 = vmul.f32 %v1048, %v1163
    %v1209 = vmul.f32 %v1049, %v1167
    %v1210 = vmul.f32 %v1050, %v1171
    %v1211 = vmul.f32 %v1051, %v1175
    %v1212 = vmul.f32 %v1052, %v1179
    %v1213 = vadd.f32 %v1181, %v1182
    %v1214 = vadd.f32 %v1213, %v1183
    %v1215 = vadd.f32 %v1214, %v1184
    %v1216 = vadd.f32 %v1215, %v1185
    %v1217 = vadd.f32 %v1216, %v1186
    %v1218 = vadd.f32 %v1217, %v1187
    %v1219 = vadd.f32 %v1218, %v1188
    %v1220 = vadd.f32 %v1219, %v1189
    %v1221 = vadd.f32 %v1220, %v1190
    %v1222 = vadd.f32 %v1221, %v1191
    %v1223 = vadd.f32 %v1222, %v1192
    %v1224 = vadd.f32 %v1223, %v1193
    %v1225 = vadd.f32 %v1224, %v1194
    %v1226 = vadd.f32 %v1225, %v1195
    %v1227 = vadd.f32 %v1226, %v1196
    %v1228 = vadd.f32 %v1227, %v1197
    %v1229 = vadd.f32 %v1228, %v1198
    %v1230 = vadd.f32 %v1229, %v1199
    %v1231 = vadd.f32 %v1230, %v1200
    %v1232 = vadd.f32 %v1231, %v1201
    %v1233 = vadd.f32 %v1232, %v1202
    %v1234 = vadd.f32 %v1233, %v1203
    %v1235 = vadd.f32 %v1234, %v1204
    %v1236 = vadd.f32 %v1235, %v1205
    %v1237 = vadd.f32 %v1236, %v1206
    %v1238 = vadd.f32 %v1237, %v1207
    %v1239 = vadd.f32 %v1238, %v1208
    %v1240 = vadd.f32 %v1239, %v1209
    %v1241 = vadd.f32 %v1240, %v1210
    %v1242 = vadd.f32 %v1241, %v1211
    %v1243 = vadd.f32 %v1242, %v1212
    %v1244 = vrot.slane %v1243, 4
    %v1245 = vadd.f32 %v1243, %v1244
    %v1246 = vrot.slane %v1245, 2
    %v1247 = vadd.f32 %v1245, %v1246
    %v1248 = vrot.slane %v1247, 1
    %v1249 = vadd.f32 %v1247, %v1248
    %1250 = vset.pattern.permute.xlu0 3
    %1251 = vperm.xlu0 %1250, %v28
    %v1252 = vpop.permute.xlu0 %1251
    %v1254 = vadd.f32 %v1249, %v1252
    %v1255 = vld [vmem:[%s1] sm:$0x1]
    %vm1256 = vcmp.gt.f32.partialorder %v1255, 0.0
    %v1257 = vsel %vm1256, %v1254, -1e+30
    %vm1258 = vcmask 1040384
    %v1259 = vsel %vm1258, %v1257, -inf
    %1260 = vmax.xlane.f32.xlu0 %v1259
    %v1261 = vpop.xlane.xlu0 %1260
    %v1262 = vsub.f32 %v1257, %v1261
    %v1263 = vmul.f32 %v1262, 1.442695
    %v1264 = vpow.pop %v1263
    %v1265 = vsel %vm1258, %v1264, 0.0
    %1266 = vadd.xlane.f32.xlu0 %v1265
    %v1267 = vpop.xlane.xlu0 %1266
    %v1268 = vlog2.pop %v1267
    %v1269 = vmul.f32 %v1268, 0.6931472
    %v1270 = vsub.f32 %v1262, %v1269
    %v1271 = vld [vmem:[%s2] sm:$0x1]
    %v1272 = vadd.f32 %v1254, %v1271
    %v1273 = vsel %vm1256, %v1272, -1e+30
    %v1274 = vsel %vm1258, %v1273, -inf
    %1275 = vmax.xlane.f32.xlu0 %v1274
    %v1276 = vpop.xlane.xlu0 %1275
    %v1277 = vlaneseq
    %v1278 = vand.u32 %v1277, 127
    %vm1279 = vcmp.ge.f32.partialorder %v1273, %v1276
    %v1280 = vsel %vm1279, %v1278, 128
    %v1281 = vsel %vm1258, %v1280, 2147483647
    %v1282 = vand.u32 %v1281, 65535
    %v1283 = vshra.s32 %v1281, 16
    %v1284 = vcvt.s32.f32 %v1282
    %v1285 = vcvt.s32.f32 %v1283
    %1286 = vmin.xlane.f32.xlu0 %v1285
    %v1287 = vpop.xlane.xlu0 %1286
    %vm1288 = vcmp.eq.f32.partialorder %v1285, %v1287
    %v1289 = vsel %vm1288, %v1284, inf
    %1290 = vmin.xlane.f32.xlu0 %v1289
    %v1291 = vpop.xlane.xlu0 %1290
    %v1292 = vcvt.f32.s32 %v1291
    %v1293 = vcvt.f32.s32 %v1287
    %v1294 = vshll.u32 %v1293, 16
    %v1295 = vadd.s32 %v1294, %v1292
    %vm1296 = vcmp.eq.s32.totalorder %v1278, %v1295
    %v1297 = vsel %vm1296, %v1270, 0.0
    %v1298 = vsel %vm1258, %v1297, 0.0
    %1299 = vadd.xlane.f32.xlu0 %v1298
    %v1300 = vpop.xlane.xlu0 %1299
    %vm1301 = vcmask 0
    %1302 = vst.msk [vmem:[#allocation2] sm:$0x1] %vm1301, %v1295
    %1303 = vst.msk [vmem:[#allocation4] sm:$0x1] %vm1301, %v1300
    // Predicated region
    $region26: #{policy_net_forward.1} parent=1 // pred_check
      _
    $region27: #{policy_net_forward.1} parent=1 // pred_check_branch
      %1305 = sbr.rel (0) target = $region29
    $region28: #{policy_net_forward.1} parent=1 // pred_region
      %1307 = vsyncadd [#allocation3], 0
      %s1309 = sshll.u32 [#allocation2], 4
      %s1310 = int_to_ptr.vmem [resolvable:$true] %s1309
      %s1311 = sshll.u32 %s6, 4
      %s1312 = int_to_ptr.hbm [resolvable:$true] %s1311
      %1314 = dma.vmem_to_hbm [thread:$0]  %s1310, 16, %s1312, [#allocation3]
    $region29: #{policy_net_forward.1} parent=1 // pred_fallthru
      _
    // Predicated region
    $region30: #{policy_net_forward.1} parent=1 // pred_check
      _
    $region31: #{policy_net_forward.1} parent=1 // pred_check_branch
      %1316 = sbr.rel (0) target = $region33
    $region32: #{policy_net_forward.1} parent=1 // pred_region
      %1318 = vsyncadd [#allocation5], 0
      %s1320 = sshll.u32 [#allocation4], 4
      %s1321 = int_to_ptr.vmem [resolvable:$true] %s1320
      %s1322 = sshll.u32 %s7, 4
      %s1323 = int_to_ptr.hbm [resolvable:$true] %s1322
      %1325 = dma.vmem_to_hbm [thread:$0]  %s1321, 16, %s1323, [#allocation5]
    $region33: #{policy_net_forward.1} parent=1 // pred_fallthru
      _
    // Predicated region
    $region34: #{policy_net_forward.1} parent=1 // pred_check
      _
    $region35: #{policy_net_forward.1} parent=1 // pred_check_branch
      %1327 = sbr.rel (0) target = $region37
    $region36: #{policy_net_forward.1} parent=1 // pred_region
      %1329 = dma.done [#allocation3], 16
    $region37: #{policy_net_forward.1} parent=1 // pred_fallthru
      _
    // Predicated region
    $region38: #{policy_net_forward.1} parent=1 // pred_check
      _
    $region39: #{policy_net_forward.1} parent=1 // pred_check_branch
      %1331 = sbr.rel (0) target = $region41
    $region40: #{policy_net_forward.1} parent=1 // pred_region
      %1333 = dma.done [#allocation5], 16
    $region41: #{policy_net_forward.1} parent=1 // pred_fallthru
      _
    %1334 = vsyncpa [#allocation3], 1
    %1335 = vsyncpa [#allocation5], 1

</llo_original>
